<compile_context>
chip_gen: v5e
topology: v5e:2x2
jax: 0.10.0
libtpu: 0.0.40
codegen_flags: <defaults>
</compile_context>

<pallas_src>
import jax
import jax.numpy as jnp
from jax.experimental import pallas as pl
from jax.experimental.pallas import tpu as pltpu

# ---- config (small, deterministic, consistent with the module) ----
VOCAB = 100                # config.vocab_size
EMBED = 32                 # config.embedding_dim
NUM_FILTERS = 8            # config.num_filters
KERNEL_SIZES = (3, 4, 5)   # config.kernel_sizes -> fc1 in_features = 3 * Nf
NUM_CLASSES = 4            # config.num_classes
BATCH = 2
SEQ_LEN = 16

KMAX = max(KERNEL_SIZES)                       # 5 shifted one-hot blocks
VPAD = 128                                     # vocab padded to MXU-native depth
NC = len(KERNEL_SIZES) * NUM_FILTERS           # 24 pooled features
BL = BATCH * SEQ_LEN                           # 32 rows


def textcnn_kernel(tok_ref, wbig_ref, bconv_ref, lout_ref, fcw_ref, fcb_ref, out_ref):
    """Whole forward in one kernel invocation.

    tok_ref   : (B*L, KMAX)       int32 VMEM  tok_shift[r, dk] = token id at row r+dk
    wbig_ref  : (KMAX*VPAD, 3*Nf) f32   VMEM  pre-folded embedding @ conv taps (zero-padded)
    bconv_ref : (1, 3*Nf)         f32   VMEM  conv biases [b3|b4|b5] (added after pooling)
    lout_ref  : (1, 3*Nf)         int32 VMEM  valid output length (L-k+1) per column
    fcw_ref   : (3*Nf, C)         f32   VMEM  fc1 weight (pre-transposed)
    fcb_ref   : (1, C)            f32   VMEM  fc1 bias
    out_ref   : (B, C)            f32   VMEM
    """
    toks = tok_ref[...]                                            # (BL, KMAX) int32

    # 1) Shifted one-hot blocks (iota == tokens), concatenated along 128-aligned lanes.
    #    This IS the embedding gather + conv tap shifts, expressed as matmul structure.
    vocab_iota = jax.lax.broadcasted_iota(jnp.int32, (BL, VPAD), 1)
    blocks = []
    for dk in range(KMAX):
        tok_col = toks[:, dk:dk + 1]                               # (BL, 1)
        blocks.append((vocab_iota == tok_col).astype(jnp.float32)) # (BL, VPAD)
    onehot = jnp.concatenate(blocks, axis=1)                       # (BL, KMAX*VPAD)

    # 2) Single MXU matmul: conv outputs (pre-bias) for every kernel size / filter / row.
    conv = jnp.dot(onehot, wbig_ref[...],
                   preferred_element_type=jnp.float32)             # (BL, NC)

    # 3) Mask invalid trailing positions per kernel-size group (also kills any
    #    cross-batch / padded-token contamination), then per-batch global max pool
    #    via a sublane-aligned (B, L, NC) reshape + one reduction.
    pos = jax.lax.broadcasted_iota(jnp.int32, (BL, NC), 0) % SEQ_LEN
    valid = pos < lout_ref[...]                                    # (BL, NC)
    masked = jnp.where(valid, conv, jnp.float32(-1e30))
    pooled = jnp.max(masked.reshape(BATCH, SEQ_LEN, NC), axis=1)   # (B, NC)

    # 4) Conv bias after the (monotone) max, ReLU, then one batched FC.
    #    Dropout is identity at inference time.
    feats = jnp.maximum(pooled + bconv_ref[...], 0.0)
    out_ref[...] = (jnp.dot(feats, fcw_ref[...], preferred_element_type=jnp.float32)
                    + fcb_ref[...])


def textcnn_forward(tokens, params):
    # Clamp token ids (review correctness concern #1) and build the KMAX shifted
    # token columns; padding at the tail only ever feeds masked positions.
    tok_flat = jnp.clip(tokens.reshape(-1).astype(jnp.int32), 0, VOCAB - 1)     # (BL,)
    padded = jnp.concatenate([tok_flat, jnp.zeros((KMAX - 1,), jnp.int32)])     # (BL+KMAX-1,)
    tok_shift = jnp.stack([padded[dk:dk + BL] for dk in range(KMAX)], axis=1)   # (BL, KMAX)

    vmem = pl.BlockSpec(memory_space=pltpu.MemorySpace.VMEM)
    return pl.pallas_call(
        textcnn_kernel,
        out_shape=jax.ShapeDtypeStruct((tokens.shape[0], NUM_CLASSES), jnp.float32),
        in_specs=[vmem, vmem, vmem, vmem, vmem, vmem],
        out_specs=vmem,
    )(tok_shift,
      params["w_big"], params["b_packed"], params["lout_cols"],
      params["fcw"], params["fcb"])


def textcnn_reference(tokens, params):
    """Pure-JAX reference mirroring the PyTorch forward semantics."""
    emb = params["embedding"][tokens]                                # (B, L, E)
    feats = []
    for wn, bn, k in (("w3", "b3", 3), ("w4", "b4", 4), ("w5", "b5", 5)):
        w = params[wn]                                               # (k, E, Nf)
        l_out = SEQ_LEN - k + 1
        acc = jnp.zeros((tokens.shape[0], l_out, NUM_FILTERS), jnp.float32)
        for dk in range(k):
            acc = acc + jnp.einsum("ble,ef->blf", emb[:, dk:dk + l_out, :], w[dk])
        acc = acc + params[bn][None, :, :]                           # (1,1,Nf)
        feats.append(jax.nn.relu(jnp.max(acc, axis=1)))              # relu(max over seq)
    cat = jnp.concatenate(feats, axis=1)                             # (B, 3*Nf)
    return cat @ params["fcw"] + params["fcb"]                       # (B, C)


def init_params(key):
    ks = jax.random.split(key, 9)
    params = {
        "embedding": 0.1 * jax.random.normal(ks[0], (VOCAB, EMBED), jnp.float32),
        "fcw": 0.1 * jax.random.normal(ks[1], (3 * NUM_FILTERS, NUM_CLASSES), jnp.float32),
        "fcb": 0.1 * jax.random.normal(ks[2], (1, NUM_CLASSES), jnp.float32),
    }
    for i, k in enumerate(KERNEL_SIZES):
        params[f"w{k}"] = 0.1 * jax.random.normal(ks[3 + 2 * i], (k, EMBED, NUM_FILTERS), jnp.float32)
        params[f"b{k}"] = 0.1 * jax.random.normal(ks[4 + 2 * i], (1, NUM_FILTERS), jnp.float32)

    # One-time packing (review item #1): pre-fold embedding @ every conv tap.
    # Row block dk of w_big holds, for each kernel-size group g (ordered k=3,4,5) and
    # filter f, (embedding @ w_g[dk]) if dk < k_g else zeros; vocab is zero-padded to 128.
    blocks = []
    for dk in range(KMAX):
        cols = []
        for k in KERNEL_SIZES:
            if dk < k:
                cols.append(params["embedding"] @ params[f"w{k}"][dk])          # (V, Nf)
            else:
                cols.append(jnp.zeros((VOCAB, NUM_FILTERS), jnp.float32))
        blk = jnp.concatenate(cols, axis=1)                                     # (V, 3*Nf)
        blocks.append(jnp.pad(blk, ((0, VPAD - VOCAB), (0, 0))))                # (VPAD, 3*Nf)
    params["w_big"] = jnp.concatenate(blocks, axis=0)                           # (KMAX*VPAD, 3*Nf)

    params["b_packed"] = jnp.concatenate(
        [params[f"b{k}"] for k in KERNEL_SIZES], axis=1)                        # (1, 3*Nf)
    params["lout_cols"] = jnp.concatenate(
        [jnp.full((1, NUM_FILTERS), SEQ_LEN - k + 1, jnp.int32)
         for k in KERNEL_SIZES], axis=1)                                        # (1, 3*Nf)
    return params


if __name__ == "__main__":
    key = jax.random.PRNGKey(0)
    pkey, tkey = jax.random.split(key)
    params = init_params(pkey)
    tokens = jax.random.randint(tkey, (BATCH, SEQ_LEN), 0, VOCAB, dtype=jnp.int32)

    out = jax.jit(textcnn_forward)(tokens, params)
    out = jax.block_until_ready(out)

    ref = textcnn_reference(tokens, params)
    assert out.shape == (BATCH, NUM_CLASSES)
    assert jnp.allclose(out, ref, atol=1e-4, rtol=1e-4), (out, ref)

    print("KERNEL_OK")
</pallas_src>

<mosaic_0001>
module attributes {stable_mosaic.version = 11 : i64} {
  func.func @textcnn_kernel(%arg0: memref<32x5xi32, #tpu.memory_space<vmem>>, %arg1: memref<640x24xf32, #tpu.memory_space<vmem>>, %arg2: memref<1x24xf32, #tpu.memory_space<vmem>>, %arg3: memref<1x24xi32, #tpu.memory_space<vmem>>, %arg4: memref<24x4xf32, #tpu.memory_space<vmem>>, %arg5: memref<1x4xf32, #tpu.memory_space<vmem>>, %arg6: memref<2x4xf32, #tpu.memory_space<vmem>>) attributes {dimension_semantics = [], scalar_prefetch = 0 : i64, scratch_operands = 0 : i64, tpu.core_type = #tpu.core_type<tc>} {
    %c0 = arith.constant 0 : index
    %c0_0 = arith.constant 0 : index
    %0 = vector.load %arg0[%c0, %c0_0] : memref<32x5xi32, #tpu.memory_space<vmem>>, vector<32x5xi32>
    %1 = tpu.iota {dimensions = array<i32: 1>} : vector<32x128xi32>
    %2 = vector.extract_strided_slice %0 {offsets = [0, 0], sizes = [32, 1], strides = [1, 1]} : vector<32x5xi32> to vector<32x1xi32>
    %3 = vector.broadcast %2 : vector<32x1xi32> to vector<32x128xi32>
    %4 = arith.cmpi eq, %1, %3 : vector<32x128xi32>
    %5 = arith.extui %4 : vector<32x128xi1> to vector<32x128xi32>
    %6 = arith.sitofp %5 : vector<32x128xi32> to vector<32x128xf32>
    %7 = vector.extract_strided_slice %0 {offsets = [0, 1], sizes = [32, 1], strides = [1, 1]} : vector<32x5xi32> to vector<32x1xi32>
    %8 = vector.broadcast %7 : vector<32x1xi32> to vector<32x128xi32>
    %9 = arith.cmpi eq, %1, %8 : vector<32x128xi32>
    %10 = arith.extui %9 : vector<32x128xi1> to vector<32x128xi32>
    %11 = arith.sitofp %10 : vector<32x128xi32> to vector<32x128xf32>
    %12 = vector.extract_strided_slice %0 {offsets = [0, 2], sizes = [32, 1], strides = [1, 1]} : vector<32x5xi32> to vector<32x1xi32>
    %13 = vector.broadcast %12 : vector<32x1xi32> to vector<32x128xi32>
    %14 = arith.cmpi eq, %1, %13 : vector<32x128xi32>
    %15 = arith.extui %14 : vector<32x128xi1> to vector<32x128xi32>
    %16 = arith.sitofp %15 : vector<32x128xi32> to vector<32x128xf32>
    %17 = vector.extract_strided_slice %0 {offsets = [0, 3], sizes = [32, 1], strides = [1, 1]} : vector<32x5xi32> to vector<32x1xi32>
    %18 = vector.broadcast %17 : vector<32x1xi32> to vector<32x128xi32>
    %19 = arith.cmpi eq, %1, %18 : vector<32x128xi32>
    %20 = arith.extui %19 : vector<32x128xi1> to vector<32x128xi32>
    %21 = arith.sitofp %20 : vector<32x128xi32> to vector<32x128xf32>
    %22 = vector.extract_strided_slice %0 {offsets = [0, 4], sizes = [32, 1], strides = [1, 1]} : vector<32x5xi32> to vector<32x1xi32>
    %23 = vector.broadcast %22 : vector<32x1xi32> to vector<32x128xi32>
    %24 = arith.cmpi eq, %1, %23 : vector<32x128xi32>
    %25 = arith.extui %24 : vector<32x128xi1> to vector<32x128xi32>
    %26 = arith.sitofp %25 : vector<32x128xi32> to vector<32x128xf32>
    %27 = tpu.concatenate %6, %11, %16, %21, %26 in 1 : vector<32x128xf32>, vector<32x128xf32>, vector<32x128xf32>, vector<32x128xf32>, vector<32x128xf32> -> vector<32x640xf32>
    %c0_1 = arith.constant 0 : index
    %c0_2 = arith.constant 0 : index
    %28 = vector.load %arg1[%c0_1, %c0_2] : memref<640x24xf32, #tpu.memory_space<vmem>>, vector<640x24xf32>
    %cst = arith.constant dense<0.000000e+00> : vector<32x24xf32>
    %29 = tpu.matmul %27, %28, %cst {dimension_numbers = #tpu.dot_dimension_numbers<[1], [0], [0], [1], [0, 0, 1, 1], [], []>} : vector<32x640xf32>, vector<640x24xf32>, vector<32x24xf32> -> vector<32x24xf32>
    %30 = tpu.iota {dimensions = array<i32: 0>} : vector<32x24xi32>
    %c16_i32 = arith.constant 16 : i32
    %c0_i32 = arith.constant 0 : i32
    %31 = arith.cmpi eq, %c16_i32, %c0_i32 : i32
    %c1_i32 = arith.constant 1 : i32
    %32 = arith.select %31, %c1_i32, %c16_i32 : i32
    %33 = vector.broadcast %32 : i32 to vector<32x24xi32>
    %34 = arith.remsi %30, %33 : vector<32x24xi32>
    %c0_i32_3 = arith.constant 0 : i32
    %35 = vector.broadcast %c0_i32_3 : i32 to vector<32x24xi32>
    %36 = arith.cmpi ne, %34, %35 : vector<32x24xi32>
    %c0_i32_4 = arith.constant 0 : i32
    %37 = vector.broadcast %c0_i32_4 : i32 to vector<32x24xi32>
    %38 = arith.cmpi slt, %34, %37 : vector<32x24xi32>
    %c0_i32_5 = arith.constant 0 : i32
    %39 = arith.cmpi slt, %32, %c0_i32_5 : i32
    %40 = vector.broadcast %39 : i1 to vector<32x24xi1>
    %41 = vector.broadcast %40 : vector<32x24xi1> to vector<32x24xi1>
    %42 = arith.xori %38, %41 : vector<32x24xi1>
    %43 = arith.andi %42, %36 : vector<32x24xi1>
    %44 = vector.broadcast %32 : i32 to vector<32x24xi32>
    %45 = arith.addi %34, %44 : vector<32x24xi32>
    %46 = arith.select %43, %45, %34 : vector<32x24xi1>, vector<32x24xi32>
    %c0_6 = arith.constant 0 : index
    %c0_7 = arith.constant 0 : index
    %47 = vector.load %arg3[%c0_6, %c0_7] : memref<1x24xi32, #tpu.memory_space<vmem>>, vector<1x24xi32>
    %48 = vector.broadcast %47 : vector<1x24xi32> to vector<32x24xi32>
    %49 = arith.cmpi slt, %46, %48 : vector<32x24xi32>
    %cst_8 = arith.constant -1.000000e+30 : f32
    %50 = vector.broadcast %cst_8 : f32 to vector<32x24xf32>
    %51 = arith.select %49, %29, %50 : vector<32x24xi1>, vector<32x24xf32>
    %52 = vector.shape_cast %51 : vector<32x24xf32> to vector<2x16x24xf32>
    %cst_9 = arith.constant dense<0xFF800000> : vector<2x24xf32>
    %53 = vector.multi_reduction <maximumf>, %52, %cst_9 [1] : vector<2x16x24xf32> to vector<2x24xf32>
    %c0_10 = arith.constant 0 : index
    %c0_11 = arith.constant 0 : index
    %54 = vector.load %arg2[%c0_10, %c0_11] : memref<1x24xf32, #tpu.memory_space<vmem>>, vector<1x24xf32>
    %55 = vector.broadcast %54 : vector<1x24xf32> to vector<2x24xf32>
    %56 = arith.addf %53, %55 : vector<2x24xf32>
    %cst_12 = arith.constant 0.000000e+00 : f32
    %57 = vector.broadcast %cst_12 : f32 to vector<2x24xf32>
    %58 = arith.maximumf %56, %57 : vector<2x24xf32>
    %c0_13 = arith.constant 0 : index
    %c0_14 = arith.constant 0 : index
    %59 = vector.load %arg4[%c0_13, %c0_14] : memref<24x4xf32, #tpu.memory_space<vmem>>, vector<24x4xf32>
    %cst_15 = arith.constant dense<0.000000e+00> : vector<2x4xf32>
    %60 = tpu.matmul %58, %59, %cst_15 {dimension_numbers = #tpu.dot_dimension_numbers<[1], [0], [0], [1], [0, 0, 1, 1], [], []>} : vector<2x24xf32>, vector<24x4xf32>, vector<2x4xf32> -> vector<2x4xf32>
    %c0_16 = arith.constant 0 : index
    %c0_17 = arith.constant 0 : index
    %61 = vector.load %arg5[%c0_16, %c0_17] : memref<1x4xf32, #tpu.memory_space<vmem>>, vector<1x4xf32>
    %62 = vector.broadcast %61 : vector<1x4xf32> to vector<2x4xf32>
    %63 = arith.addf %60, %62 : vector<2x4xf32>
    %c0_18 = arith.constant 0 : index
    %c0_19 = arith.constant 0 : index
    %64 = vector.load %arg6[%c0_18, %c0_19] : memref<2x4xf32, #tpu.memory_space<vmem>>, vector<2x4xf32>
    tpu.vector_store %arg6[%c0_18, %c0_19], %63 {strides = array<i32>} : memref<2x4xf32, #tpu.memory_space<vmem>>, vector<2x4xf32>,
    return
  }
}

</mosaic_0001>

<llo_original>
// kernel: textcnn_forward.1
$region0: #{textcnn_forward.1}
  #allocation0 [shape = 'u32[]', space=smem, size = 0x4, offset = 0x4, fixed_abs, tag = 'smem constant byte address 0x4 - core index']
  #allocation1 [shape = 'u32[72,128]{1,0:T(1,128)}', space=vmem, size = 0x9000, scoped, tag = 'internal scratch']
  %s0 = inlined_call_operand.vmem [shape: s32[32,5], index: 0, kind: input, shape index: {}]
  %s1 = inlined_call_operand.vmem [shape: f32[640,24], index: 1, kind: input, shape index: {}]
  %s2 = inlined_call_operand.vmem [shape: f32[1,24], index: 2, kind: input, shape index: {}]
  %s3 = inlined_call_operand.vmem [shape: s32[1,24], index: 3, kind: input, shape index: {}]
  %s4 = inlined_call_operand.vmem [shape: f32[24,4], index: 4, kind: input, shape index: {}]
  %s5 = inlined_call_operand.vmem [shape: f32[1,4], index: 5, kind: input, shape index: {}]
  %s6 = inlined_call_operand.hbm [shape: f32[2,4], index: 6, kind: output, shape index: {}]
  %s7 = sld [smem:[#allocation0]]
  $region34: #{textcnn_forward.1} parent=0
    _
  %s9 = ssub.s32 1, %s7
  %s10 = scalar_select 0, %s9, %s7
  $region1: #{textcnn_forward.1} parent=0
    #allocation2 [shape = 'u8[1024]{0}', space=vmem, size = 0x400, scoped, tag = 'output window, operand 0, single buffered']
    #allocation3 [shape = 's32[1]{0}', space=sflag, size = 0x4, scoped, tag = 'scoped memory for textcnn_forward.1']
    %11 = vsyncpa [#allocation3], 0
    // Predicated region
    $region2: #{textcnn_forward.1} parent=1 // pred_check
      _
    $region3: #{textcnn_forward.1} parent=1 // pred_check_branch
      %13 = sbr.rel (0) target = $region5
    $region4: #{textcnn_forward.1} parent=1 // pred_region
      _
    $region5: #{textcnn_forward.1} parent=1 // pred_fallthru
      _
    // Predicated region
    $region6: #{textcnn_forward.1} parent=1 // pred_check
      _
    $region7: #{textcnn_forward.1} parent=1 // pred_check_branch
      %15 = sbr.rel (0) target = $region9
    $region8: #{textcnn_forward.1} parent=1 // pred_region
      _
    $region9: #{textcnn_forward.1} parent=1 // pred_fallthru
      _
    // Predicated region
    $region10: #{textcnn_forward.1} parent=1 // pred_check
      _
    $region11: #{textcnn_forward.1} parent=1 // pred_check_branch
      %17 = sbr.rel (0) target = $region13
    $region12: #{textcnn_forward.1} parent=1 // pred_region
      _
    $region13: #{textcnn_forward.1} parent=1 // pred_fallthru
      _
    // Predicated region
    $region14: #{textcnn_forward.1} parent=1 // pred_check
      _
    $region15: #{textcnn_forward.1} parent=1 // pred_check_branch
      %19 = sbr.rel (0) target = $region17
    $region16: #{textcnn_forward.1} parent=1 // pred_region
      _
    $region17: #{textcnn_forward.1} parent=1 // pred_fallthru
      _
    // Predicated region
    $region18: #{textcnn_forward.1} parent=1 // pred_check
      _
    $region19: #{textcnn_forward.1} parent=1 // pred_check_branch
      %21 = sbr.rel (0) target = $region21
    $region20: #{textcnn_forward.1} parent=1 // pred_region
      _
    $region21: #{textcnn_forward.1} parent=1 // pred_fallthru
      _
    // Predicated region
    $region22: #{textcnn_forward.1} parent=1 // pred_check
      _
    $region23: #{textcnn_forward.1} parent=1 // pred_check_branch
      %23 = sbr.rel (0) target = $region25
    $region24: #{textcnn_forward.1} parent=1 // pred_region
      _
    $region25: #{textcnn_forward.1} parent=1 // pred_fallthru
      _
    %v24 = vld [vmem:[%s0] sm:$0xff]
    %v25 = vld [vmem:[%s0 + $0x8] sm:$0xff]
    %v26 = vld [vmem:[%s0 + $0x10] sm:$0xff]
    %v27 = vld [vmem:[%s0 + $0x18] sm:$0xff]
    %v28 = vlaneseq
    %v29 = vand.u32 %v28, 127
    %30 = vset.pattern.permute.xlu0 0
    %31 = vperm.xlu0 %30, %v24
    %v32 = vpop.permute.xlu0 %31
    %33 = vset.pattern.permute.xlu0 0
    %34 = vperm.xlu0 %33, %v25
    %v35 = vpop.permute.xlu0 %34
    %36 = vset.pattern.permute.xlu0 0
    %37 = vperm.xlu0 %36, %v26
    %v38 = vpop.permute.xlu0 %37
    %39 = vset.pattern.permute.xlu0 0
    %40 = vperm.xlu0 %39, %v27
    %v41 = vpop.permute.xlu0 %40
    %vm42 = vcmp.eq.s32.totalorder %v29, %v32
    %vm43 = vcmp.eq.s32.totalorder %v29, %v35
    %vm44 = vcmp.eq.s32.totalorder %v29, %v38
    %vm45 = vcmp.eq.s32.totalorder %v29, %v41
    %v46 = vsel %vm42, 1, 0
    %v47 = vsel %vm43, 1, 0
    %v48 = vsel %vm44, 1, 0
    %v49 = vsel %vm45, 1, 0
    %v50 = vcvt.s32.f32 %v46
    %v51 = vcvt.s32.f32 %v47
    %v52 = vcvt.s32.f32 %v48
    %v53 = vcvt.s32.f32 %v49
    %54 = vset.pattern.permute.xlu0 1
    %55 = vperm.xlu0 %54, %v24
    %v56 = vpop.permute.xlu0 %55
    %57 = vset.pattern.permute.xlu0 1
    %58 = vperm.xlu0 %57, %v25
    %v59 = vpop.permute.xlu0 %58
    %60 = vset.pattern.permute.xlu0 1
    %61 = vperm.xlu0 %60, %v26
    %v62 = vpop.permute.xlu0 %61
    %63 = vset.pattern.permute.xlu0 1
    %64 = vperm.xlu0 %63, %v27
    %v65 = vpop.permute.xlu0 %64
    %vm66 = vcmp.eq.s32.totalorder %v29, %v56
    %vm67 = vcmp.eq.s32.totalorder %v29, %v59
    %vm68 = vcmp.eq.s32.totalorder %v29, %v62
    %vm69 = vcmp.eq.s32.totalorder %v29, %v65
    %v70 = vsel %vm66, 1, 0
    %v71 = vsel %vm67, 1, 0
    %v72 = vsel %vm68, 1, 0
    %v73 = vsel %vm69, 1, 0
    %v74 = vcvt.s32.f32 %v70
    %v75 = vcvt.s32.f32 %v71
    %v76 = vcvt.s32.f32 %v72
    %v77 = vcvt.s32.f32 %v73
    %78 = vset.pattern.permute.xlu0 2
    %79 = vperm.xlu0 %78, %v24
    %v80 = vpop.permute.xlu0 %79
    %81 = vset.pattern.permute.xlu0 2
    %82 = vperm.xlu0 %81, %v25
    %v83 = vpop.permute.xlu0 %82
    %84 = vset.pattern.permute.xlu0 2
    %85 = vperm.xlu0 %84, %v26
    %v86 = vpop.permute.xlu0 %85
    %87 = vset.pattern.permute.xlu0 2
    %88 = vperm.xlu0 %87, %v27
    %v89 = vpop.permute.xlu0 %88
    %vm90 = vcmp.eq.s32.totalorder %v29, %v80
    %vm91 = vcmp.eq.s32.totalorder %v29, %v83
    %vm92 = vcmp.eq.s32.totalorder %v29, %v86
    %vm93 = vcmp.eq.s32.totalorder %v29, %v89
    %v94 = vsel %vm90, 1, 0
    %v95 = vsel %vm91, 1, 0
    %v96 = vsel %vm92, 1, 0
    %v97 = vsel %vm93, 1, 0
    %v98 = vcvt.s32.f32 %v94
    %v99 = vcvt.s32.f32 %v95
    %v100 = vcvt.s32.f32 %v96
    %v101 = vcvt.s32.f32 %v97
    %102 = vset.pattern.permute.xlu0 3
    %103 = vperm.xlu0 %102, %v24
    %v104 = vpop.permute.xlu0 %103
    %105 = vset.pattern.permute.xlu0 3
    %106 = vperm.xlu0 %105, %v25
    %v107 = vpop.permute.xlu0 %106
    %108 = vset.pattern.permute.xlu0 3
    %109 = vperm.xlu0 %108, %v26
    %v110 = vpop.permute.xlu0 %109
    %111 = vset.pattern.permute.xlu0 3
    %112 = vperm.xlu0 %111, %v27
    %v113 = vpop.permute.xlu0 %112
    %vm114 = vcmp.eq.s32.totalorder %v29, %v104
    %vm115 = vcmp.eq.s32.totalorder %v29, %v107
    %vm116 = vcmp.eq.s32.totalorder %v29, %v110
    %vm117 = vcmp.eq.s32.totalorder %v29, %v113
    %v118 = vsel %vm114, 1, 0
    %v119 = vsel %vm115, 1, 0
    %v120 = vsel %vm116, 1, 0
    %v121 = vsel %vm117, 1, 0
    %v122 = vcvt.s32.f32 %v118
    %v123 = vcvt.s32.f32 %v119
    %v124 = vcvt.s32.f32 %v120
    %v125 = vcvt.s32.f32 %v121
    %126 = vset.pattern.permute.xlu0 4
    %127 = vperm.xlu0 %126, %v24
    %v128 = vpop.permute.xlu0 %127
    %129 = vset.pattern.permute.xlu0 4
    %130 = vperm.xlu0 %129, %v25
    %v131 = vpop.permute.xlu0 %130
    %132 = vset.pattern.permute.xlu0 4
    %133 = vperm.xlu0 %132, %v26
    %v134 = vpop.permute.xlu0 %133
    %135 = vset.pattern.permute.xlu0 4
    %136 = vperm.xlu0 %135, %v27
    %v137 = vpop.permute.xlu0 %136
    %vm138 = vcmp.eq.s32.totalorder %v29, %v128
    %vm139 = vcmp.eq.s32.totalorder %v29, %v131
    %vm140 = vcmp.eq.s32.totalorder %v29, %v134
    %vm141 = vcmp.eq.s32.totalorder %v29, %v137
    %v142 = vsel %vm138, 1, 0
    %v143 = vsel %vm139, 1, 0
    %v144 = vsel %vm140, 1, 0
    %v145 = vsel %vm141, 1, 0
    %v146 = vcvt.s32.f32 %v142
    %v147 = vcvt.s32.f32 %v143
    %v148 = vcvt.s32.f32 %v144
    %v149 = vcvt.s32.f32 %v145
    %v150 = vld [vmem:[%s1] sm:$0xff]
    %v151 = vld [vmem:[%s1 + $0x8] sm:$0xff]
    %v152 = vld [vmem:[%s1 + $0x10] sm:$0xff]
    %v153 = vld [vmem:[%s1 + $0x18] sm:$0xff]
    %v154 = vld [vmem:[%s1 + $0x20] sm:$0xff]
    %v155 = vld [vmem:[%s1 + $0x28] sm:$0xff]
    %v156 = vld [vmem:[%s1 + $0x30] sm:$0xff]
    %v157 = vld [vmem:[%s1 + $0x38] sm:$0xff]
    %v158 = vld [vmem:[%s1 + $0x40] sm:$0xff]
    %v159 = vld [vmem:[%s1 + $0x48] sm:$0xff]
    %v160 = vld [vmem:[%s1 + $0x50] sm:$0xff]
    %v161 = vld [vmem:[%s1 + $0x58] sm:$0xff]
    %v162 = vld [vmem:[%s1 + $0x60] sm:$0xff]
    %v163 = vld [vmem:[%s1 + $0x68] sm:$0xff]
    %v164 = vld [vmem:[%s1 + $0x70] sm:$0xff]
    %v165 = vld [vmem:[%s1 + $0x78] sm:$0xff]
    %v166 = vld [vmem:[%s1 + $0x80] sm:$0xff]
    %v167 = vld [vmem:[%s1 + $0x88] sm:$0xff]
    %v168 = vld [vmem:[%s1 + $0x90] sm:$0xff]
    %v169 = vld [vmem:[%s1 + $0x98] sm:$0xff]
    %v170 = vld [vmem:[%s1 + $0xa0] sm:$0xff]
    %v171 = vld [vmem:[%s1 + $0xa8] sm:$0xff]
    %v172 = vld [vmem:[%s1 + $0xb0] sm:$0xff]
    %v173 = vld [vmem:[%s1 + $0xb8] sm:$0xff]
    %v174 = vld [vmem:[%s1 + $0xc0] sm:$0xff]
    %v175 = vld [vmem:[%s1 + $0xc8] sm:$0xff]
    %v176 = vld [vmem:[%s1 + $0xd0] sm:$0xff]
    %v177 = vld [vmem:[%s1 + $0xd8] sm:$0xff]
    %v178 = vld [vmem:[%s1 + $0xe0] sm:$0xff]
    %v179 = vld [vmem:[%s1 + $0xe8] sm:$0xff]
    %v180 = vld [vmem:[%s1 + $0xf0] sm:$0xff]
    %v181 = vld [vmem:[%s1 + $0xf8] sm:$0xff]
    %v182 = vld [vmem:[%s1 + $0x100] sm:$0xff]
    %v183 = vld [vmem:[%s1 + $0x108] sm:$0xff]
    %v184 = vld [vmem:[%s1 + $0x110] sm:$0xff]
    %v185 = vld [vmem:[%s1 + $0x118] sm:$0xff]
    %v186 = vld [vmem:[%s1 + $0x120] sm:$0xff]
    %v187 = vld [vmem:[%s1 + $0x128] sm:$0xff]
    %v188 = vld [vmem:[%s1 + $0x130] sm:$0xff]
    %v189 = vld [vmem:[%s1 + $0x138] sm:$0xff]
    %v190 = vld [vmem:[%s1 + $0x140] sm:$0xff]
    %v191 = vld [vmem:[%s1 + $0x148] sm:$0xff]
    %v192 = vld [vmem:[%s1 + $0x150] sm:$0xff]
    %v193 = vld [vmem:[%s1 + $0x158] sm:$0xff]
    %v194 = vld [vmem:[%s1 + $0x160] sm:$0xff]
    %v195 = vld [vmem:[%s1 + $0x168] sm:$0xff]
    %v196 = vld [vmem:[%s1 + $0x170] sm:$0xff]
    %v197 = vld [vmem:[%s1 + $0x178] sm:$0xff]
    %v198 = vld [vmem:[%s1 + $0x180] sm:$0xff]
    %v199 = vld [vmem:[%s1 + $0x188] sm:$0xff]
    %v200 = vld [vmem:[%s1 + $0x190] sm:$0xff]
    %v201 = vld [vmem:[%s1 + $0x198] sm:$0xff]
    %v202 = vld [vmem:[%s1 + $0x1a0] sm:$0xff]
    %v203 = vld [vmem:[%s1 + $0x1a8] sm:$0xff]
    %v204 = vld [vmem:[%s1 + $0x1b0] sm:$0xff]
    %v205 = vld [vmem:[%s1 + $0x1b8] sm:$0xff]
    %v206 = vld [vmem:[%s1 + $0x1c0] sm:$0xff]
    %v207 = vld [vmem:[%s1 + $0x1c8] sm:$0xff]
    %v208 = vld [vmem:[%s1 + $0x1d0] sm:$0xff]
    %v209 = vld [vmem:[%s1 + $0x1d8] sm:$0xff]
    %v210 = vld [vmem:[%s1 + $0x1e0] sm:$0xff]
    %v211 = vld [vmem:[%s1 + $0x1e8] sm:$0xff]
    %v212 = vld [vmem:[%s1 + $0x1f0] sm:$0xff]
    %v213 = vld [vmem:[%s1 + $0x1f8] sm:$0xff]
    %v214 = vld [vmem:[%s1 + $0x200] sm:$0xff]
    %v215 = vld [vmem:[%s1 + $0x208] sm:$0xff]
    %v216 = vld [vmem:[%s1 + $0x210] sm:$0xff]
    %v217 = vld [vmem:[%s1 + $0x218] sm:$0xff]
    %v218 = vld [vmem:[%s1 + $0x220] sm:$0xff]
    %v219 = vld [vmem:[%s1 + $0x228] sm:$0xff]
    %v220 = vld [vmem:[%s1 + $0x230] sm:$0xff]
    %v221 = vld [vmem:[%s1 + $0x238] sm:$0xff]
    %v222 = vld [vmem:[%s1 + $0x240] sm:$0xff]
    %v223 = vld [vmem:[%s1 + $0x248] sm:$0xff]
    %v224 = vld [vmem:[%s1 + $0x250] sm:$0xff]
    %v225 = vld [vmem:[%s1 + $0x258] sm:$0xff]
    %v226 = vld [vmem:[%s1 + $0x260] sm:$0xff]
    %v227 = vld [vmem:[%s1 + $0x268] sm:$0xff]
    %v228 = vld [vmem:[%s1 + $0x270] sm:$0xff]
    %v229 = vld [vmem:[%s1 + $0x278] sm:$0xff]
    %230 = vmatpush.msra.mxu0 %v165
    %231 = vmatpush.msra.mxu0 %v164
    %232 = vmatpush.msra.mxu0 %v163
    %233 = vmatpush.msra.mxu0 %v162
    %234 = vmatpush.msra.mxu0 %v161
    %235 = vmatpush.msra.mxu0 %v160
    %236 = vmatpush.msra.mxu0 %v159
    %237 = vmatpush.msra.mxu0 %v158
    %238 = vmatpush.msra.mxu0 %v157
    %239 = vmatpush.msra.mxu0 %v156
    %240 = vmatpush.msra.mxu0 %v155
    %241 = vmatpush.msra.mxu0 %v154
    %242 = vmatpush.msra.mxu0 %v153
    %243 = vmatpush.msra.mxu0 %v152
    %244 = vmatpush.msra.mxu0 %v151
    %245 = vmatpush.msra.mxu0 %v150
    %246 = vmatmul.f32.gmra.mxu0 %v50
    %v247 = vpop.f32.mrf.mxu0
    %v248 = vadd.f32 0.0, %v247
    %249 = vmatmul.f32.gmra.mxu0 %v51
    %v250 = vpop.f32.mrf.mxu0
    %v251 = vadd.f32 0.0, %v250
    %252 = vmatmul.f32.gmra.mxu0 %v52
    %v253 = vpop.f32.mrf.mxu0
    %v254 = vadd.f32 0.0, %v253
    %255 = vmatmul.f32.gmra.mxu0 %v53
    %v256 = vpop.f32.mrf.mxu0
    %v257 = vadd.f32 0.0, %v256
    %258 = vdwg.mxu0
    %259 = vmatpush.msra.mxu0 %v181
    %260 = vmatpush.msra.mxu0 %v180
    %261 = vmatpush.msra.mxu0 %v179
    %262 = vmatpush.msra.mxu0 %v178
    %263 = vmatpush.msra.mxu0 %v177
    %264 = vmatpush.msra.mxu0 %v176
    %265 = vmatpush.msra.mxu0 %v175
    %266 = vmatpush.msra.mxu0 %v174
    %267 = vmatpush.msra.mxu0 %v173
    %268 = vmatpush.msra.mxu0 %v172
    %269 = vmatpush.msra.mxu0 %v171
    %270 = vmatpush.msra.mxu0 %v170
    %271 = vmatpush.msra.mxu0 %v169
    %272 = vmatpush.msra.mxu0 %v168
    %273 = vmatpush.msra.mxu0 %v167
    %274 = vmatpush.msra.mxu0 %v166
    %275 = vmatmul.f32.gmra.mxu0 %v74
    %v276 = vpop.f32.mrf.mxu0
    %v277 = vadd.f32 %v248, %v276
    %278 = vmatmul.f32.gmra.mxu0 %v75
    %v279 = vpop.f32.mrf.mxu0
    %v280 = vadd.f32 %v251, %v279
    %281 = vmatmul.f32.gmra.mxu0 %v76
    %v282 = vpop.f32.mrf.mxu0
    %v283 = vadd.f32 %v254, %v282
    %284 = vmatmul.f32.gmra.mxu0 %v77
    %v285 = vpop.f32.mrf.mxu0
    %v286 = vadd.f32 %v257, %v285
    %287 = vdwg.mxu0
    %288 = vmatpush.msra.mxu0 %v197
    %289 = vmatpush.msra.mxu0 %v196
    %290 = vmatpush.msra.mxu0 %v195
    %291 = vmatpush.msra.mxu0 %v194
    %292 = vmatpush.msra.mxu0 %v193
    %293 = vmatpush.msra.mxu0 %v192
    %294 = vmatpush.msra.mxu0 %v191
    %295 = vmatpush.msra.mxu0 %v190
    %296 = vmatpush.msra.mxu0 %v189
    %297 = vmatpush.msra.mxu0 %v188
    %298 = vmatpush.msra.mxu0 %v187
    %299 = vmatpush.msra.mxu0 %v186
    %300 = vmatpush.msra.mxu0 %v185
    %301 = vmatpush.msra.mxu0 %v184
    %302 = vmatpush.msra.mxu0 %v183
    %303 = vmatpush.msra.mxu0 %v182
    %304 = vmatmul.f32.gmra.mxu0 %v98
    %v305 = vpop.f32.mrf.mxu0
    %v306 = vadd.f32 %v277, %v305
    %307 = vmatmul.f32.gmra.mxu0 %v99
    %v308 = vpop.f32.mrf.mxu0
    %v309 = vadd.f32 %v280, %v308
    %310 = vmatmul.f32.gmra.mxu0 %v100
    %v311 = vpop.f32.mrf.mxu0
    %v312 = vadd.f32 %v283, %v311
    %313 = vmatmul.f32.gmra.mxu0 %v101
    %v314 = vpop.f32.mrf.mxu0
    %v315 = vadd.f32 %v286, %v314
    %316 = vdwg.mxu0
    %317 = vmatpush.msra.mxu0 %v213
    %318 = vmatpush.msra.mxu0 %v212
    %319 = vmatpush.msra.mxu0 %v211
    %320 = vmatpush.msra.mxu0 %v210
    %321 = vmatpush.msra.mxu0 %v209
    %322 = vmatpush.msra.mxu0 %v208
    %323 = vmatpush.msra.mxu0 %v207
    %324 = vmatpush.msra.mxu0 %v206
    %325 = vmatpush.msra.mxu0 %v205
    %326 = vmatpush.msra.mxu0 %v204
    %327 = vmatpush.msra.mxu0 %v203
    %328 = vmatpush.msra.mxu0 %v202
    %329 = vmatpush.msra.mxu0 %v201
    %330 = vmatpush.msra.mxu0 %v200
    %331 = vmatpush.msra.mxu0 %v199
    %332 = vmatpush.msra.mxu0 %v198
    %333 = vmatmul.f32.gmra.mxu0 %v122
    %v334 = vpop.f32.mrf.mxu0
    %v335 = vadd.f32 %v306, %v334
    %336 = vmatmul.f32.gmra.mxu0 %v123
    %v337 = vpop.f32.mrf.mxu0
    %v338 = vadd.f32 %v309, %v337
    %339 = vmatmul.f32.gmra.mxu0 %v124
    %v340 = vpop.f32.mrf.mxu0
    %v341 = vadd.f32 %v312, %v340
    %342 = vmatmul.f32.gmra.mxu0 %v125
    %v343 = vpop.f32.mrf.mxu0
    %v344 = vadd.f32 %v315, %v343
    %345 = vdwg.mxu0
    %346 = vmatpush.msra.mxu0 %v229
    %347 = vmatpush.msra.mxu0 %v228
    %348 = vmatpush.msra.mxu0 %v227
    %349 = vmatpush.msra.mxu0 %v226
    %350 = vmatpush.msra.mxu0 %v225
    %351 = vmatpush.msra.mxu0 %v224
    %352 = vmatpush.msra.mxu0 %v223
    %353 = vmatpush.msra.mxu0 %v222
    %354 = vmatpush.msra.mxu0 %v221
    %355 = vmatpush.msra.mxu0 %v220
    %356 = vmatpush.msra.mxu0 %v219
    %357 = vmatpush.msra.mxu0 %v218
    %358 = vmatpush.msra.mxu0 %v217
    %359 = vmatpush.msra.mxu0 %v216
    %360 = vmatpush.msra.mxu0 %v215
    %361 = vmatpush.msra.mxu0 %v214
    %362 = vmatmul.f32.gmra.mxu0 %v146
    %v363 = vpop.f32.mrf.mxu0
    %v364 = vadd.f32 %v335, %v363
    %365 = vmatmul.f32.gmra.mxu0 %v147
    %v366 = vpop.f32.mrf.mxu0
    %v367 = vadd.f32 %v338, %v366
    %368 = vmatmul.f32.gmra.mxu0 %v148
    %v369 = vpop.f32.mrf.mxu0
    %v370 = vadd.f32 %v341, %v369
    %371 = vmatmul.f32.gmra.mxu0 %v149
    %v372 = vpop.f32.mrf.mxu0
    %v373 = vadd.f32 %v344, %v372
    %374 = vdwg.mxu0
    %v375 = vlaneseq
    %v376 = vshrl.u32 %v375, 7
    %v377 = vadd.s32 %v376, 8
    %v378 = vadd.s32 %v376, 16
    %v379 = vadd.s32 %v376, 24
    %vm380 = vcmp.lt.s32.totalorder %v376, 0
    %v381 = vsub.s32 0, %v376
    %v382 = vsel %vm380, %v381, %v376
    %v383 = vshrl.u32 %v382, 4
    %v384 = vand.u32 %v382, 15
    %v385 = vsub.s32 0, %v384
    %v386 = vsel %vm380, %v385, %v384
    %vm387 = vcmp.lt.s32.totalorder %v377, 0
    %v388 = vsub.s32 0, %v377
    %v389 = vsel %vm387, %v388, %v377
    %v390 = vshrl.u32 %v389, 4
    %v391 = vand.u32 %v389, 15
    %v392 = vsub.s32 0, %v391
    %v393 = vsel %vm387, %v392, %v391
    %vm394 = vcmp.lt.s32.totalorder %v378, 0
    %v395 = vsub.s32 0, %v378
    %v396 = vsel %vm394, %v395, %v378
    %v397 = vshrl.u32 %v396, 4
    %v398 = vand.u32 %v396, 15
    %v399 = vsub.s32 0, %v398
    %v400 = vsel %vm394, %v399, %v398
    %vm401 = vcmp.lt.s32.totalorder %v379, 0
    %v402 = vsub.s32 0, %v379
    %v403 = vsel %vm401, %v402, %v379
    %v404 = vshrl.u32 %v403, 4
    %v405 = vand.u32 %v403, 15
    %v406 = vsub.s32 0, %v405
    %v407 = vsel %vm401, %v406, %v405
    %vm408 = vcmp.ne.s32.totalorder %v386, 0
    %vm409 = vcmp.ne.s32.totalorder %v393, 0
    %vm410 = vcmp.ne.s32.totalorder %v400, 0
    %vm411 = vcmp.ne.s32.totalorder %v407, 0
    %vm412 = vcmp.lt.s32.totalorder %v386, 0
    %vm413 = vcmp.lt.s32.totalorder %v393, 0
    %vm414 = vcmp.lt.s32.totalorder %v400, 0
    %vm415 = vcmp.lt.s32.totalorder %v407, 0
    %vm416 = vmand %vm412, %vm408
    %vm417 = vmand %vm413, %vm409
    %vm418 = vmand %vm414, %vm410
    %vm419 = vmand %vm415, %vm411
    %v420 = vadd.s32 %v386, 16
    %v421 = vadd.s32 %v393, 16
    %v422 = vadd.s32 %v400, 16
    %v423 = vadd.s32 %v407, 16
    %v424 = vsel %vm416, %v420, %v386
    %v425 = vsel %vm417, %v421, %v393
    %v426 = vsel %vm418, %v422, %v400
    %v427 = vsel %vm419, %v423, %v407
    %v428 = vld [vmem:[%s3] sm:$0x1]
    %v429 = vperm.slane %v428, 0
    %vm430 = vcmp.lt.s32.totalorder %v424, %v429
    %vm431 = vcmp.lt.s32.totalorder %v425, %v429
    %vm432 = vcmp.lt.s32.totalorder %v426, %v429
    %vm433 = vcmp.lt.s32.totalorder %v427, %v429
    %v434 = vsel %vm430, %v364, -1e+30
    %v435 = vsel %vm431, %v367, -1e+30
    %v436 = vsel %vm432, %v370, -1e+30
    %v437 = vsel %vm433, %v373, -1e+30
    %vm438 = vcmask 195584
    %v439 = vsel %vm438, %v434, -inf
    %v440 = vsel %vm438, %v435, -inf
    %v441 = vmax.f32 %v439, %v440
    %v442 = vrot.slane %v441, 4
    %v443 = vmax.f32 %v441, %v442
    %v444 = vrot.slane %v443, 2
    %v445 = vmax.f32 %v443, %v444
    %v446 = vrot.slane %v445, 1
    %v447 = vmax.f32 %v445, %v446
    %v448 = vsel %vm438, %v436, -inf
    %v449 = vsel %vm438, %v437, -inf
    %v450 = vmax.f32 %v448, %v449
    %v451 = vrot.slane %v450, 4
    %v452 = vmax.f32 %v450, %v451
    %v453 = vrot.slane %v452, 2
    %v454 = vmax.f32 %v452, %v453
    %v455 = vrot.slane %v454, 1
    %v456 = vmax.f32 %v454, %v455
    %v457 = vld [vmem:[%s2] sm:$0x1]
    %v459 = vperm.slane %v457, 0
    %v461 = vadd.f32 %v447, %v459
    %v462 = vadd.f32 %v456, %v459
    %v463 = vmax.f32 %v461, 0.0
    %v464 = vmax.f32 %v462, 0.0
    %v465 = vld [vmem:[%s4] sm:$0xff]
    %v466 = vld [vmem:[%s4 + $0x8] sm:$0xff]
    %v467 = vld [vmem:[%s4 + $0x10] sm:$0xff]
    %v468 = vld [vmem:[%s5] sm:$0x1]
    %v470 = vperm.slane %v468, 0
    %v474 = vrot.slane %v464, 7
    %vm475 = vcmask 1041409
    %v476 = vsel %vm475, %v474, %v463
    %v477 = vsel %vm438, %v476, 0
    %479 = vmatpush.msra.mxu0 0.0
    %480 = vmatpush.msra.mxu0 0.0
    %481 = vmatpush.msra.mxu0 0.0
    %482 = vmatpush.msra.mxu0 0.0
    %483 = vmatpush.msra.mxu0 0.0
    %484 = vmatpush.msra.mxu0 0.0
    %485 = vmatpush.msra.mxu0 0.0
    %486 = vmatpush.msra.mxu0 0.0
    %487 = vmatpush.msra.mxu0 0.0
    %488 = vmatpush.msra.mxu0 0.0
    %489 = vmatpush.msra.mxu0 0.0
    %490 = vmatpush.msra.mxu0 0.0
    %491 = vmatpush.msra.mxu0 0.0
    %492 = vmatpush.msra.mxu0 %v467
    %493 = vmatpush.msra.mxu0 %v466
    %494 = vmatpush.msra.mxu0 %v465
    %495 = vmatmul.f32.gmra.mxu0 %v477
    %v496 = vpop.f32.mrf.mxu0
    %v497 = vadd.f32 %v470, %v496
    %498 = vdwg.mxu0
    %vm499 = vcmask 25600
    %500 = vst.msk [vmem:[#allocation2] sm:$0x3] %vm499, %v497
    // Predicated region
    $region26: #{textcnn_forward.1} parent=1 // pred_check
      _
    $region27: #{textcnn_forward.1} parent=1 // pred_check_branch
      %502 = sbr.rel (0) target = $region29
    $region28: #{textcnn_forward.1} parent=1 // pred_region
      %504 = vsyncadd [#allocation3], 0
      %s506 = sshll.u32 [#allocation2], 4
      %s507 = int_to_ptr.vmem [resolvable:$true] %s506
      %s508 = sshll.u32 %s6, 4
      %s509 = int_to_ptr.hbm [resolvable:$true] %s508
      %511 = dma.vmem_to_hbm [thread:$0]  %s507, 32, %s509, [#allocation3]
    $region29: #{textcnn_forward.1} parent=1 // pred_fallthru
      _
    // Predicated region
    $region30: #{textcnn_forward.1} parent=1 // pred_check
      _
    $region31: #{textcnn_forward.1} parent=1 // pred_check_branch
      %513 = sbr.rel (0) target = $region33
    $region32: #{textcnn_forward.1} parent=1 // pred_region
      %515 = dma.done [#allocation3], 32
    $region33: #{textcnn_forward.1} parent=1 // pred_fallthru
      _
    %516 = vsyncpa [#allocation3], 1

</llo_original>
